<compile_context>
chip_gen: v6e
topology: v6e:2x2x1
jax: 0.10.0
libtpu: 0.0.40
codegen_flags: <defaults>
</compile_context>

<pallas_src>
import jax
import jax.numpy as jnp
from jax.experimental import pallas as pl
from jax.experimental.pallas import tpu as pltpu


def discriminator_kernel(x_ref, w1_ref, b1_ref, w2_ref, b2_ref, w3_ref, b3_ref, o_ref):
    """Fused 3-layer MLP: bf16 MXU matmuls with f32 accumulation, f32 activations."""
    # x arrives as f32 (single HBM pass); cast to bf16 on-chip for the MXU.
    x = x_ref[...].astype(jnp.bfloat16)                              # (tb, D)

    # Layer 1: Linear(D -> H1) + LeakyReLU(0.2)   [MXU, f32 accumulate]
    h1 = jnp.dot(x, w1_ref[...], preferred_element_type=jnp.float32) + b1_ref[...]
    h1 = jnp.maximum(h1, 0.2 * h1)                                   # LeakyReLU (mul+max)

    # Layer 2: Linear(H1 -> H2) + LeakyReLU(0.2)  [MXU, bf16 operands]
    h2 = jnp.dot(h1.astype(jnp.bfloat16), w2_ref[...],
                 preferred_element_type=jnp.float32) + b2_ref[...]
    h2 = jnp.maximum(h2, 0.2 * h2)

    # Layer 3: Linear(H2 -> 1) + Sigmoid.  An N=1 matmul wastes a full MXU
    # pass for a single output column, so do it as a VPU multiply + cross-lane
    # (XLU) reduction against the (1, H2) weight row instead.
    z = jnp.sum(h2 * w3_ref[...], axis=-1, keepdims=True) + b3_ref[...]
    o_ref[...] = jax.nn.sigmoid(z)


def _round_up(n, m):
    return ((n + m - 1) // m) * m


def discriminator_forward(x, params, *, tb=512):
    """x: [B, input_dim] float32; params from init_params (f32, (in, out) layout)."""
    B, D = x.shape
    H1 = params["w1"].shape[1]
    H2 = params["w2"].shape[1]

    # ---- per-generation VMEM budget --------------------------------------
    try:
        vmem_cap = int(pltpu.get_tpu_info().vmem_capacity_bytes)
    except Exception:
        vmem_cap = 64 * 1024 * 1024                 # conservative (v7x per-core)
    vmem_limit = max(32 * 1024 * 1024, int(vmem_cap * 0.8))
    vmem_limit = min(vmem_limit, vmem_cap)

    # ---- batch tile --------------------------------------------------------
    # * multiple of 8 sublanes, never larger than the (rounded-up) batch
    # * at least 2 grid steps when B allows it (megacore sharding on v7x)
    # * double-buffered f32 x tile kept within ~half of the VMEM budget
    tb = max(8, _round_up(tb, 8))
    tb = min(tb, _round_up(B, 8))
    tb = min(tb, max(8, _round_up(pl.cdiv(B, 2), 8)))
    max_tb_by_vmem = ((vmem_limit // 2) // (2 * D * 4)) // 8 * 8
    if max_tb_by_vmem >= 8:
        tb = min(tb, max_tb_by_vmem)

    grid = (pl.cdiv(B, tb),)   # ragged last block; OOB rows masked on writeback

    # Weights: bf16 MXU operands (small, one-time cast); biases / w3 stay f32.
    w1 = params["w1"].astype(jnp.bfloat16)                       # (D, H1)
    b1 = params["b1"].reshape(1, H1).astype(jnp.float32)
    w2 = params["w2"].astype(jnp.bfloat16)                       # (H1, H2)
    b2 = params["b2"].reshape(1, H2).astype(jnp.float32)
    w3 = params["w3"].reshape(1, H2).astype(jnp.float32)         # row vector for VPU reduce
    b3 = params["b3"].reshape(1, 1).astype(jnp.float32)

    const = lambda i: (0, 0)          # constant-index weight blocks
    single = pl.Buffered(1)           # single-buffer constant operands (halve VMEM)

    out = pl.pallas_call(
        discriminator_kernel,
        out_shape=jax.ShapeDtypeStruct((B, 1), jnp.float32),
        grid_spec=pltpu.PrefetchScalarGridSpec(
            num_scalar_prefetch=0,
            grid=grid,
            in_specs=[
                pl.BlockSpec((tb, D), lambda i: (i, 0)),                  # x tile (f32 stream)
                pl.BlockSpec((D, H1), const, pipeline_mode=single),       # w1 (resident)
                pl.BlockSpec((1, H1), const, pipeline_mode=single),       # b1
                pl.BlockSpec((H1, H2), const, pipeline_mode=single),      # w2
                pl.BlockSpec((1, H2), const, pipeline_mode=single),       # b2
                pl.BlockSpec((1, H2), const, pipeline_mode=single),       # w3 row
                pl.BlockSpec((1, 1), const, pipeline_mode=single),        # b3
            ],
            out_specs=pl.BlockSpec((tb, 1), lambda i: (i, 0)),
        ),
        compiler_params=pltpu.CompilerParams(
            dimension_semantics=("parallel",),     # megacore-shards the batch axis
            vmem_limit_bytes=vmem_limit,           # per-generation budget (see above)
        ),
    )(x, w1, b1, w2, b2, w3, b3)

    return out


def init_params(key, input_dim):
    """Deterministic synthetic parameter init (PyTorch-style uniform fan-in bounds)."""
    ks = jax.random.split(key, 6)

    def linear(kw, kb, fan_in, fan_out):
        bound = 1.0 / jnp.sqrt(fan_in)
        # Stored as (in, out): transposed relative to PyTorch's (out, in).
        w = jax.random.uniform(kw, (fan_in, fan_out), jnp.float32, -bound, bound)
        b = jax.random.uniform(kb, (1, fan_out), jnp.float32, -bound, bound)
        return w, b

    w1, b1 = linear(ks[0], ks[1], input_dim, 256)
    w2, b2 = linear(ks[2], ks[3], 256, 128)
    w3, b3 = linear(ks[4], ks[5], 128, 1)
    return {"w1": w1, "b1": b1, "w2": w2, "b2": b2, "w3": w3, "b3": b3}


def reference_forward(x, p):
    """Plain-JAX f32 reference matching PyTorch semantics."""
    h1 = x @ p["w1"] + p["b1"]
    h1 = jnp.where(h1 > 0, h1, 0.2 * h1)
    h2 = h1 @ p["w2"] + p["b2"]
    h2 = jnp.where(h2 > 0, h2, 0.2 * h2)
    z = h2 @ p["w3"] + p["b3"]
    return jax.nn.sigmoid(z)


if __name__ == "__main__":
    key = jax.random.PRNGKey(0)
    k_param, k_x = jax.random.split(key)

    # B not a multiple of the tile exercises the ragged-last-block path;
    # the tb clamp also guarantees >= 2 grid steps here.
    B, INPUT_DIM = 200, 64
    params = init_params(k_param, INPUT_DIM)
    x = jax.random.normal(k_x, (B, INPUT_DIM), jnp.float32)

    out = discriminator_forward(x, params, tb=128)
    out = jax.block_until_ready(out)

    ref = reference_forward(x, params)
    assert out.shape == (B, 1), out.shape
    # bf16 MXU operands with f32 accumulation -> loose tolerance vs f32 reference.
    assert jnp.allclose(out, ref, atol=2e-2, rtol=2e-2), float(jnp.max(jnp.abs(out - ref)))

    print("KERNEL_OK")
</pallas_src>

<mosaic_0001>
module attributes {stable_mosaic.version = 11 : i64} {
  func.func @discriminator_kernel(%arg0: i32, %arg1: memref<104x64xf32, #tpu.memory_space<vmem>>, %arg2: memref<64x256xbf16, #tpu.memory_space<vmem>>, %arg3: memref<1x256xf32, #tpu.memory_space<vmem>>, %arg4: memref<256x128xbf16, #tpu.memory_space<vmem>>, %arg5: memref<1x128xf32, #tpu.memory_space<vmem>>, %arg6: memref<1x128xf32, #tpu.memory_space<vmem>>, %arg7: memref<1x1xf32, #tpu.memory_space<vmem>>, %arg8: memref<104x1xf32, #tpu.memory_space<vmem>>) attributes {dimension_semantics = [#tpu.dimension_semantics<parallel>], iteration_bounds = array<i64: 2>, scalar_prefetch = 0 : i64, scratch_operands = 0 : i64, tpu.core_type = #tpu.core_type<tc>, window_params = [{transform_indices = @transform_0, window_bounds = array<i64: 104, 64>}, {pipeline_mode = #tpu.pipeline_mode<synchronous>, transform_indices = @transform_1, window_bounds = array<i64: 64, 256>}, {pipeline_mode = #tpu.pipeline_mode<synchronous>, transform_indices = @transform_2, window_bounds = array<i64: 1, 256>}, {pipeline_mode = #tpu.pipeline_mode<synchronous>, transform_indices = @transform_3, window_bounds = array<i64: 256, 128>}, {pipeline_mode = #tpu.pipeline_mode<synchronous>, transform_indices = @transform_4, window_bounds = array<i64: 1, 128>}, {pipeline_mode = #tpu.pipeline_mode<synchronous>, transform_indices = @transform_5, window_bounds = array<i64: 1, 128>}, {pipeline_mode = #tpu.pipeline_mode<synchronous>, transform_indices = @transform_6, window_bounds = array<i64: 1, 1>}, {transform_indices = @transform_7, window_bounds = array<i64: 104, 1>}]} {
    %c0 = arith.constant 0 : index
    %c0_0 = arith.constant 0 : index
    %0 = vector.load %arg1[%c0, %c0_0] : memref<104x64xf32, #tpu.memory_space<vmem>>, vector<104x64xf32>
    %1 = arith.truncf %0 : vector<104x64xf32> to vector<104x64xbf16>
    %c0_1 = arith.constant 0 : index
    %c0_2 = arith.constant 0 : index
    %2 = vector.load %arg2[%c0_1, %c0_2] : memref<64x256xbf16, #tpu.memory_space<vmem>>, vector<64x256xbf16>
    %cst = arith.constant dense<0.000000e+00> : vector<104x256xf32>
    %3 = tpu.matmul %1, %2, %cst {dimension_numbers = #tpu.dot_dimension_numbers<[1], [0], [0], [1], [0, 0, 1, 1], [], []>} : vector<104x64xbf16>, vector<64x256xbf16>, vector<104x256xf32> -> vector<104x256xf32>
    %c0_3 = arith.constant 0 : index
    %c0_4 = arith.constant 0 : index
    %4 = vector.load %arg3[%c0_3, %c0_4] : memref<1x256xf32, #tpu.memory_space<vmem>>, vector<1x256xf32>
    %5 = vector.broadcast %4 : vector<1x256xf32> to vector<104x256xf32>
    %6 = arith.addf %3, %5 : vector<104x256xf32>
    %cst_5 = arith.constant 2.000000e-01 : f32
    %7 = vector.broadcast %cst_5 : f32 to vector<104x256xf32>
    %8 = arith.mulf %7, %6 : vector<104x256xf32>
    %9 = arith.maximumf %6, %8 : vector<104x256xf32>
    %10 = arith.truncf %9 : vector<104x256xf32> to vector<104x256xbf16>
    %c0_6 = arith.constant 0 : index
    %c0_7 = arith.constant 0 : index
    %11 = vector.load %arg4[%c0_6, %c0_7] : memref<256x128xbf16, #tpu.memory_space<vmem>>, vector<256x128xbf16>
    %cst_8 = arith.constant dense<0.000000e+00> : vector<104x128xf32>
    %12 = tpu.matmul %10, %11, %cst_8 {dimension_numbers = #tpu.dot_dimension_numbers<[1], [0], [0], [1], [0, 0, 1, 1], [], []>} : vector<104x256xbf16>, vector<256x128xbf16>, vector<104x128xf32> -> vector<104x128xf32>
    %c0_9 = arith.constant 0 : index
    %c0_10 = arith.constant 0 : index
    %13 = vector.load %arg5[%c0_9, %c0_10] : memref<1x128xf32, #tpu.memory_space<vmem>>, vector<1x128xf32>
    %14 = vector.broadcast %13 : vector<1x128xf32> to vector<104x128xf32>
    %15 = arith.addf %12, %14 : vector<104x128xf32>
    %cst_11 = arith.constant 2.000000e-01 : f32
    %16 = vector.broadcast %cst_11 : f32 to vector<104x128xf32>
    %17 = arith.mulf %16, %15 : vector<104x128xf32>
    %18 = arith.maximumf %15, %17 : vector<104x128xf32>
    %c0_12 = arith.constant 0 : index
    %c0_13 = arith.constant 0 : index
    %19 = vector.load %arg6[%c0_12, %c0_13] : memref<1x128xf32, #tpu.memory_space<vmem>>, vector<1x128xf32>
    %20 = vector.broadcast %19 : vector<1x128xf32> to vector<104x128xf32>
    %21 = arith.mulf %18, %20 : vector<104x128xf32>
    %cst_14 = arith.constant dense<0.000000e+00> : vector<104xf32>
    %22 = vector.multi_reduction <add>, %21, %cst_14 [1] : vector<104x128xf32> to vector<104xf32>
    %23 = vector.shape_cast %22 : vector<104xf32> to vector<104x1xf32>
    %c0_15 = arith.constant 0 : index
    %c0_16 = arith.constant 0 : index
    %24 = vector.load %arg7[%c0_15, %c0_16] : memref<1x1xf32, #tpu.memory_space<vmem>>, vector<1x1xf32>
    %25 = vector.broadcast %24 : vector<1x1xf32> to vector<104x1xf32>
    %26 = arith.addf %23, %25 : vector<104x1xf32>
    %27 = arith.negf %26 : vector<104x1xf32>
    %28 = math.exp %27 : vector<104x1xf32>
    %cst_17 = arith.constant 1.000000e+00 : f32
    %29 = vector.broadcast %cst_17 : f32 to vector<104x1xf32>
    %30 = arith.addf %29, %28 : vector<104x1xf32>
    %31 = arith.divf %29, %30 : vector<104x1xf32>
    %c0_18 = arith.constant 0 : index
    %c0_19 = arith.constant 0 : index
    %32 = vector.load %arg8[%c0_18, %c0_19] : memref<104x1xf32, #tpu.memory_space<vmem>>, vector<104x1xf32>
    tpu.vector_store %arg8[%c0_18, %c0_19], %31 {strides = array<i32>} : memref<104x1xf32, #tpu.memory_space<vmem>>, vector<104x1xf32>,
    return
  }
  func.func @transform_0(%arg0: i32) -> (i32, i32) {
    %c0_i32 = arith.constant 0 : i32
    %c0_i32_0 = arith.constant 0 : i32
    return %arg0, %c0_i32 : i32, i32
  }
  func.func @transform_1(%arg0: i32) -> (i32, i32) {
    %c0_i32 = arith.constant 0 : i32
    %c0_i32_0 = arith.constant 0 : i32
    %c0_i32_1 = arith.constant 0 : i32
    return %c0_i32, %c0_i32_0 : i32, i32
  }
  func.func @transform_2(%arg0: i32) -> (i32, i32) {
    %c0_i32 = arith.constant 0 : i32
    %c0_i32_0 = arith.constant 0 : i32
    %c0_i32_1 = arith.constant 0 : i32
    return %c0_i32, %c0_i32_0 : i32, i32
  }
  func.func @transform_3(%arg0: i32) -> (i32, i32) {
    %c0_i32 = arith.constant 0 : i32
    %c0_i32_0 = arith.constant 0 : i32
    %c0_i32_1 = arith.constant 0 : i32
    return %c0_i32, %c0_i32_0 : i32, i32
  }
  func.func @transform_4(%arg0: i32) -> (i32, i32) {
    %c0_i32 = arith.constant 0 : i32
    %c0_i32_0 = arith.constant 0 : i32
    %c0_i32_1 = arith.constant 0 : i32
    return %c0_i32, %c0_i32_0 : i32, i32
  }
  func.func @transform_5(%arg0: i32) -> (i32, i32) {
    %c0_i32 = arith.constant 0 : i32
    %c0_i32_0 = arith.constant 0 : i32
    %c0_i32_1 = arith.constant 0 : i32
    return %c0_i32, %c0_i32_0 : i32, i32
  }
  func.func @transform_6(%arg0: i32) -> (i32, i32) {
    %c0_i32 = arith.constant 0 : i32
    %c0_i32_0 = arith.constant 0 : i32
    %c0_i32_1 = arith.constant 0 : i32
    return %c0_i32, %c0_i32_0 : i32, i32
  }
  func.func @transform_7(%arg0: i32) -> (i32, i32) {
    %c0_i32 = arith.constant 0 : i32
    %c0_i32_0 = arith.constant 0 : i32
    return %arg0, %c0_i32 : i32, i32
  }
}

</mosaic_0001>

<llo_original>
// kernel: tpu_custom_call.1
$region0: #{tpu_custom_call.1}
  #allocation0 [shape = 'u32[]', space=smem, size = 0x4, offset = 0x4, fixed_abs, tag = 'smem constant byte address 0x4 - core index']
  #allocation1 [shape = 'u32[144,128]{1,0:T(1,128)}', space=vmem, size = 0x12000, scoped, tag = 'internal scratch']
  #allocation2 [shape = 'f32[1,1]{1,0:T(1,128)S(1)}', space=vmem, size = 0x200, scoped, tag = 'scoped memory for tpu_custom_call.1']
  %s0 = inlined_call_operand.vmem [shape: f32[200,64], index: 0, kind: input, shape index: {}]
  %s1 = inlined_call_operand.vmem [shape: bf16[64,256], index: 1, kind: input, shape index: {}]
  %s2 = inlined_call_operand.vmem [shape: f32[1,256], index: 2, kind: input, shape index: {}]
  %s3 = inlined_call_operand.vmem [shape: bf16[256,128], index: 3, kind: input, shape index: {}]
  %s4 = inlined_call_operand.vmem [shape: f32[1,128], index: 4, kind: input, shape index: {}]
  %s5 = inlined_call_operand.vmem [shape: f32[1,128], index: 5, kind: input, shape index: {}]
  %s6 = inlined_call_operand.<no memory space> [shape: f32[1,1], index: 6, kind: input, shape index: {}]
  %s7 = inlined_call_operand.vmem [shape: f32[200,1], index: 7, kind: output, shape index: {}]
  %s8 = sld [smem:[#allocation0]]
  $region109: #{tpu_custom_call.1} parent=0
    _
  %s10 = ssub.s32 1, %s8
  %s11 = scalar_select 0, %s10, %s8
  %v12 = vstv %s6
  %13 = vst [vmem:[#allocation2] sm:$0x1] %v12
  $region1: #{tpu_custom_call.1} parent=0
    #allocation3 [shape = 'u8[106496]{0}', space=vmem, size = 0x1a000, scoped, tag = 'output window, operand 0']
    loop: start=0, step=1, limit=4
    $region2: #{tpu_custom_call.1} parent=1 // loop_pre_header
      _
    $region3: #{tpu_custom_call.1} parent=1 // loop_header
      %s15 = sphi 0, %s19
      %p16 = scmp.ge.s32.totalorder %s15, 4
      %s25 = sphi 0, %s27
      %s28 = sphi 0, %s25
      %s29 = sphi 0, %s28
      %s45 = sphi 0, %s29
      %s49 = sphi 0, %s49
      %s51 = sphi 0, %s49
      %s52 = sphi 0, %s51
      %s66 = sphi 0, %s52
      %s70 = sphi 0, %s70
      %s72 = sphi 0, %s70
      %s73 = sphi 0, %s72
      %s87 = sphi 0, %s73
      %s91 = sphi 0, %s91
      %s93 = sphi 0, %s91
      %s94 = sphi 0, %s93
      %s108 = sphi 0, %s94
      %s112 = sphi 0, %s112
      %s114 = sphi 0, %s112
      %s115 = sphi 0, %s114
      %s129 = sphi 0, %s115
      %s133 = sphi 0, %s133
      %s135 = sphi 0, %s133
      %s136 = sphi 0, %s135
      %s150 = sphi 0, %s136
      %s154 = sphi 0, %s154
      %s156 = sphi 0, %s154
      %s157 = sphi 0, %s156
      %s171 = sphi 0, %s157
      %s177 = sphi 0, %s179
      %s180 = sphi 0, %s177
      %s181 = sphi 0, %s180
      %s197 = sphi 0, %s181
    $region4: #{tpu_custom_call.1} parent=1 // loop_header_branch
      %18 = sbr.rel (%p16) target = $region8
    $region5: #{tpu_custom_call.1} parent=1 // loop_body
      %s20 = ssub.s32 %s15, 1
      %s21 = ssub.s32 %s15, 2
      %s22 = sadd.s32 %s15, 1
      %s23 = ssub.s32 %s15, %s22
      %p24 = scmp.eq.s32.totalorder %s23, 0
      %s26 = sadd.s32 %s25, 1
      %s27 = scalar_select %p24, %s25, %s26
      %p30 = pneg %p24
      %p31 = scmp.eq.s32.totalorder %s15, 1
      %p32 = por %p30, %p31
      %p33 = scmp.ne.s32.totalorder %s25, %s28
      %p34 = scmp.eq.s32.totalorder %s15, 0
      %p35 = por %p33, %p34
      %p36 = scmp.ne.s32.totalorder %s25, %s28
      %p37 = scmp.eq.s32.totalorder %s20, 1
      %p38 = por %p36, %p37
      %p39 = scmp.ne.s32.totalorder %s28, %s29
      %p40 = scmp.eq.s32.totalorder %s20, 0
      %p41 = por %p39, %p40
      %p42 = scmp.ne.s32.totalorder %s28, %s29
      %p43 = scmp.eq.s32.totalorder %s21, 1
      %p44 = por %p42, %p43
      %p46 = scmp.ne.s32.totalorder %s29, %s45
      %p47 = scmp.eq.s32.totalorder %s21, 0
      %p48 = por %p46, %p47
      %s50 = sadd.s32 %s49, 1
      %p53 = scmp.eq.s32.totalorder %s15, 1
      %p54 = scmp.ne.s32.totalorder %s49, %s51
      %p55 = scmp.eq.s32.totalorder %s15, 0
      %p56 = por %p54, %p55
      %p57 = scmp.ne.s32.totalorder %s49, %s51
      %p58 = scmp.eq.s32.totalorder %s20, 1
      %p59 = por %p57, %p58
      %p60 = scmp.ne.s32.totalorder %s51, %s52
      %p61 = scmp.eq.s32.totalorder %s20, 0
      %p62 = por %p60, %p61
      %p63 = scmp.ne.s32.totalorder %s51, %s52
      %p64 = scmp.eq.s32.totalorder %s21, 1
      %p65 = por %p63, %p64
      %p67 = scmp.ne.s32.totalorder %s52, %s66
      %p68 = scmp.eq.s32.totalorder %s21, 0
      %p69 = por %p67, %p68
      %s71 = sadd.s32 %s70, 1
      %p74 = scmp.eq.s32.totalorder %s15, 1
      %p75 = scmp.ne.s32.totalorder %s70, %s72
      %p76 = scmp.eq.s32.totalorder %s15, 0
      %p77 = por %p75, %p76
      %p78 = scmp.ne.s32.totalorder %s70, %s72
      %p79 = scmp.eq.s32.totalorder %s20, 1
      %p80 = por %p78, %p79
      %p81 = scmp.ne.s32.totalorder %s72, %s73
      %p82 = scmp.eq.s32.totalorder %s20, 0
      %p83 = por %p81, %p82
      %p84 = scmp.ne.s32.totalorder %s72, %s73
      %p85 = scmp.eq.s32.totalorder %s21, 1
      %p86 = por %p84, %p85
      %p88 = scmp.ne.s32.totalorder %s73, %s87
      %p89 = scmp.eq.s32.totalorder %s21, 0
      %p90 = por %p88, %p89
      %s92 = sadd.s32 %s91, 1
      %p95 = scmp.eq.s32.totalorder %s15, 1
      %p96 = scmp.ne.s32.totalorder %s91, %s93
      %p97 = scmp.eq.s32.totalorder %s15, 0
      %p98 = por %p96, %p97
      %p99 = scmp.ne.s32.totalorder %s91, %s93
      %p100 = scmp.eq.s32.totalorder %s20, 1
      %p101 = por %p99, %p100
      %p102 = scmp.ne.s32.totalorder %s93, %s94
      %p103 = scmp.eq.s32.totalorder %s20, 0
      %p104 = por %p102, %p103
      %p105 = scmp.ne.s32.totalorder %s93, %s94
      %p106 = scmp.eq.s32.totalorder %s21, 1
      %p107 = por %p105, %p106
      %p109 = scmp.ne.s32.totalorder %s94, %s108
      %p110 = scmp.eq.s32.totalorder %s21, 0
      %p111 = por %p109, %p110
      %s113 = sadd.s32 %s112, 1
      %p116 = scmp.eq.s32.totalorder %s15, 1
      %p117 = scmp.ne.s32.totalorder %s112, %s114
      %p118 = scmp.eq.s32.totalorder %s15, 0
      %p119 = por %p117, %p118
      %p120 = scmp.ne.s32.totalorder %s112, %s114
      %p121 = scmp.eq.s32.totalorder %s20, 1
      %p122 = por %p120, %p121
      %p123 = scmp.ne.s32.totalorder %s114, %s115
      %p124 = scmp.eq.s32.totalorder %s20, 0
      %p125 = por %p123, %p124
      %p126 = scmp.ne.s32.totalorder %s114, %s115
      %p127 = scmp.eq.s32.totalorder %s21, 1
      %p128 = por %p126, %p127
      %p130 = scmp.ne.s32.totalorder %s115, %s129
      %p131 = scmp.eq.s32.totalorder %s21, 0
      %p132 = por %p130, %p131
      %s134 = sadd.s32 %s133, 1
      %p137 = scmp.eq.s32.totalorder %s15, 1
      %p138 = scmp.ne.s32.totalorder %s133, %s135
      %p139 = scmp.eq.s32.totalorder %s15, 0
      %p140 = por %p138, %p139
      %p141 = scmp.ne.s32.totalorder %s133, %s135
      %p142 = scmp.eq.s32.totalorder %s20, 1
      %p143 = por %p141, %p142
      %p144 = scmp.ne.s32.totalorder %s135, %s136
      %p145 = scmp.eq.s32.totalorder %s20, 0
      %p146 = por %p144, %p145
      %p147 = scmp.ne.s32.totalorder %s135, %s136
      %p148 = scmp.eq.s32.totalorder %s21, 1
      %p149 = por %p147, %p148
      %p151 = scmp.ne.s32.totalorder %s136, %s150
      %p152 = scmp.eq.s32.totalorder %s21, 0
      %p153 = por %p151, %p152
      %s155 = sadd.s32 %s154, 1
      %p158 = scmp.eq.s32.totalorder %s15, 1
      %p159 = scmp.ne.s32.totalorder %s154, %s156
      %p160 = scmp.eq.s32.totalorder %s15, 0
      %p161 = por %p159, %p160
      %p162 = scmp.ne.s32.totalorder %s154, %s156
      %p163 = scmp.eq.s32.totalorder %s20, 1
      %p164 = por %p162, %p163
      %p165 = scmp.ne.s32.totalorder %s156, %s157
      %p166 = scmp.eq.s32.totalorder %s20, 0
      %p167 = por %p165, %p166
      %p168 = scmp.ne.s32.totalorder %s156, %s157
      %p169 = scmp.eq.s32.totalorder %s21, 1
      %p170 = por %p168, %p169
      %p172 = scmp.ne.s32.totalorder %s157, %s171
      %p173 = scmp.eq.s32.totalorder %s21, 0
      %p174 = por %p172, %p173
      %s175 = ssub.s32 %s15, %s22
      %p176 = scmp.eq.s32.totalorder %s175, 0
      %s178 = sadd.s32 %s177, 1
      %s179 = scalar_select %p176, %s177, %s178
      %p182 = pneg %p176
      %p183 = scmp.eq.s32.totalorder %s15, 1
      %p184 = por %p182, %p183
      %p185 = scmp.ne.s32.totalorder %s177, %s180
      %p186 = scmp.eq.s32.totalorder %s15, 0
      %p187 = por %p185, %p186
      %p188 = scmp.ne.s32.totalorder %s177, %s180
      %p189 = scmp.eq.s32.totalorder %s20, 1
      %p190 = por %p188, %p189
      %p191 = scmp.ne.s32.totalorder %s180, %s181
      %p192 = scmp.eq.s32.totalorder %s20, 0
      %p193 = por %p191, %p192
      %p194 = scmp.ne.s32.totalorder %s180, %s181
      %p195 = scmp.eq.s32.totalorder %s21, 1
      %p196 = por %p194, %p195
      %p198 = scmp.ne.s32.totalorder %s181, %s197
      %p199 = scmp.eq.s32.totalorder %s21, 0
      %p200 = por %p198, %p199
      %p201 = scmp.le.s32.totalorder 1, %s15
      %p202 = scmp.lt.s32.totalorder %s15, 3
      %p203 = pnand %p201, %p202
      %p204 = pneg %p203
      // Predicated region
      $region9: #{tpu_custom_call.1} parent=5 // pred_check
        _
      $region10: #{tpu_custom_call.1} parent=5 // pred_check_branch
        %206 = sbr.rel (%p203) target = $region12
      $region11: #{tpu_custom_call.1} parent=5 // pred_region
        %s207 = ssub.s32 %s15, 1
        // Predicated region
        $region13: #{tpu_custom_call.1} parent=11 // pred_check
          %p208 = pneg %p62
        $region14: #{tpu_custom_call.1} parent=11 // pred_check_branch
          %210 = sbr.rel (%p208) target = $region16
        $region15: #{tpu_custom_call.1} parent=11 // pred_region
          _
        $region16: #{tpu_custom_call.1} parent=11 // pred_fallthru
          _
        // Predicated region
        $region17: #{tpu_custom_call.1} parent=11 // pred_check
          %p211 = pneg %p83
        $region18: #{tpu_custom_call.1} parent=11 // pred_check_branch
          %213 = sbr.rel (%p211) target = $region20
        $region19: #{tpu_custom_call.1} parent=11 // pred_region
          _
        $region20: #{tpu_custom_call.1} parent=11 // pred_fallthru
          _
        // Predicated region
        $region21: #{tpu_custom_call.1} parent=11 // pred_check
          %p214 = pneg %p104
        $region22: #{tpu_custom_call.1} parent=11 // pred_check_branch
          %216 = sbr.rel (%p214) target = $region24
        $region23: #{tpu_custom_call.1} parent=11 // pred_region
          _
        $region24: #{tpu_custom_call.1} parent=11 // pred_fallthru
          _
        // Predicated region
        $region25: #{tpu_custom_call.1} parent=11 // pred_check
          %p217 = pneg %p125
        $region26: #{tpu_custom_call.1} parent=11 // pred_check_branch
          %219 = sbr.rel (%p217) target = $region28
        $region27: #{tpu_custom_call.1} parent=11 // pred_region
          _
        $region28: #{tpu_custom_call.1} parent=11 // pred_fallthru
          _
        // Predicated region
        $region29: #{tpu_custom_call.1} parent=11 // pred_check
          %p220 = pneg %p146
        $region30: #{tpu_custom_call.1} parent=11 // pred_check_branch
          %222 = sbr.rel (%p220) target = $region32
        $region31: #{tpu_custom_call.1} parent=11 // pred_region
          _
        $region32: #{tpu_custom_call.1} parent=11 // pred_fallthru
          _
        // Predicated region
        $region33: #{tpu_custom_call.1} parent=11 // pred_check
          %p223 = pneg %p167
        $region34: #{tpu_custom_call.1} parent=11 // pred_check_branch
          %225 = sbr.rel (%p223) target = $region36
        $region35: #{tpu_custom_call.1} parent=11 // pred_region
          _
        $region36: #{tpu_custom_call.1} parent=11 // pred_fallthru
          _
      $region12: #{tpu_custom_call.1} parent=5 // pred_fallthru
        _
      %p226 = scmp.lt.s32.totalorder %s15, 2
      // Predicated region
      $region37: #{tpu_custom_call.1} parent=5 // pred_check
        %p227 = pneg %p226
      $region38: #{tpu_custom_call.1} parent=5 // pred_check_branch
        %229 = sbr.rel (%p227) target = $region40
      $region39: #{tpu_custom_call.1} parent=5 // pred_region
        // Predicated region
        $region41: #{tpu_custom_call.1} parent=39 // pred_check
          %p230 = pneg %p35
        $region42: #{tpu_custom_call.1} parent=39 // pred_check_branch
          %232 = sbr.rel (%p230) target = $region44
        $region43: #{tpu_custom_call.1} parent=39 // pred_region
          %s233 = smul.u32 13, %s15
          %s234 = ssub.s32 25, %s233
          %p235 = scmp.lt.s32.totalorder %s234, 13
          %s236 = scalar_select %p235, %s234, 13
          %s237 = smul.u32 128, %s236
          %p238 = scmp.lt.s32.totalorder %s233, 24
          %s239 = scalar_select %p238, %s233, 24
          %s240 = smul.addr %s239, 8
          %s241 = scalar_lea.vmem %s0, %s240
          %s242 = smul.u32 13, %s15
          %s243 = ssub.s32 25, %s242
          %p244 = scmp.lt.s32.totalorder %s243, 13
          %s245 = scalar_select %p244, %s243, 13
          %s246 = smul.u32 128, %s245
        $region44: #{tpu_custom_call.1} parent=39 // pred_fallthru
          _
      $region40: #{tpu_custom_call.1} parent=5 // pred_fallthru
        _
      %p247 = scmp.le.s32.totalorder 1, %s15
      %p248 = scmp.lt.s32.totalorder %s15, 3
      %p249 = pnand %p247, %p248
      %p250 = pneg %p249
      // Predicated region
      $region45: #{tpu_custom_call.1} parent=5 // pred_check
        _
      $region46: #{tpu_custom_call.1} parent=5 // pred_check_branch
        %252 = sbr.rel (%p249) target = $region48
      $region47: #{tpu_custom_call.1} parent=5 // pred_region
        %s253 = ssub.s32 %s15, 1
        %s254 = smul.u32 13, %s20
        %s255 = ssub.s32 25, %s254
        %p256 = scmp.lt.s32.totalorder %s255, 13
        %s257 = scalar_select %p256, %s255, 13
        %s258 = smul.u32 128, %s257
        %p259 = scmp.lt.s32.totalorder %s254, 24
        %s260 = scalar_select %p259, %s254, 24
        %s261 = smul.addr %s260, 8
        %s262 = scalar_lea.vmem %s0, %s261
        %p263 = pneg %p41
        %p264 = pneg %p38
        %p265 = pneg %p62
        %p266 = pneg %p59
        %p267 = pneg %p83
        %p268 = pneg %p80
        %p269 = pneg %p104
        %p270 = pneg %p101
        %p271 = pneg %p125
        %p272 = pneg %p122
        %p273 = pneg %p146
        %p274 = pneg %p143
        %p275 = pneg %p167
        %p276 = pneg %p164
        %p277 = pneg %p193
        %p278 = pneg %p190
        %s279 = sand.u32 %s180, 1
        %s280 = sand.u32 %s180, 1
        %s281 = smul.addr %s280, 104
        %s282 = scalar_lea.vmem [#allocation3], %s281
        %s283 = smul.u32 13, %s20
        %s284 = ssub.s32 25, %s283
        %p285 = scmp.lt.s32.totalorder %s284, 13
        %s286 = scalar_select %p285, %s284, 13
        %s287 = smul.u32 128, %s286
        %p288 = scmp.lt.s32.totalorder %s283, 24
        %s289 = scalar_select %p288, %s283, 24
        %s290 = smul.addr %s289, 8
        %s291 = scalar_lea.vmem %s0, %s290
        %s292 = smul.u32 13, %s20
        %s293 = ssub.s32 25, %s292
        %p294 = scmp.lt.s32.totalorder %s293, 13
        %s295 = scalar_select %p294, %s293, 13
        %s296 = smul.u32 128, %s295
        %s297 = smul.u32 13, %s20
        %s298 = ssub.s32 25, %s297
        %p299 = scmp.lt.s32.totalorder %s298, 13
        %s300 = scalar_select %p299, %s298, 13
        %s301 = smul.u32 128, %s300
        %v303 = vld [vmem:[%s291] sm:$0xff]
        %v304 = vld [vmem:[%s291 + $0x8] sm:$0xff]
        %v305 = vld [vmem:[%s291 + $0x10] sm:$0xff]
        %v306 = vld [vmem:[%s291 + $0x18] sm:$0xff]
        %v307 = vld [vmem:[%s291 + $0x20] sm:$0xff]
        %v308 = vld [vmem:[%s291 + $0x28] sm:$0xff]
        %v309 = vld [vmem:[%s291 + $0x30] sm:$0xff]
        %v310 = vld [vmem:[%s291 + $0x38] sm:$0xff]
        %v311 = vld [vmem:[%s291 + $0x40] sm:$0xff]
        %v312 = vld [vmem:[%s291 + $0x48] sm:$0xff]
        %v313 = vld [vmem:[%s291 + $0x50] sm:$0xff]
        %v314 = vld [vmem:[%s291 + $0x58] sm:$0xff]
        %v315 = vld [vmem:[%s291 + $0x60] sm:$0xff]
        %v316 = vpack.c.bf16 %v304, %v303
        %v317 = vpack.c.bf16 %v306, %v305
        %v318 = vpack.c.bf16 %v308, %v307
        %v319 = vpack.c.bf16 %v310, %v309
        %v320 = vpack.c.bf16 %v312, %v311
        %v321 = vpack.c.bf16 %v314, %v313
        %v322 = vpack.c.bf16 %v315, %v315
        %v323 = vld [vmem:[%s1] sm:$0xff]
        %v324 = vld [vmem:[%s1 + $0x8] sm:$0xff]
        %v325 = vld [vmem:[%s1 + $0x10] sm:$0xff]
        %v326 = vld [vmem:[%s1 + $0x18] sm:$0xff]
        %v327 = vld [vmem:[%s1 + $0x20] sm:$0xff]
        %v328 = vld [vmem:[%s1 + $0x28] sm:$0xff]
        %v329 = vld [vmem:[%s1 + $0x30] sm:$0xff]
        %v330 = vld [vmem:[%s1 + $0x38] sm:$0xff]
        %v331 = vld [vmem:[%s2] sm:$0x3]
        %v333 = vlaneseq
        %v334 = vshrl.u32 %v333, 7
        %v335 = vsub.s32 0, %v334
        %v336 = vrot.slane %v331, %v335
        %v337 = vlaneseq
        %v338 = vshrl.u32 %v337, 7
        %v339 = vsub.s32 1, %v338
        %v340 = vrot.slane %v331, %v339
        %v351 = vunpack.c.l.b16 %v323
        %v352 = vunpack.c.h.b16 %v323
        %v353 = vunpack.c.l.b16 %v324
        %v354 = vunpack.c.h.b16 %v324
        %v355 = vunpack.c.l.b16 %v325
        %v356 = vunpack.c.h.b16 %v325
        %v357 = vunpack.c.l.b16 %v326
        %v358 = vunpack.c.h.b16 %v326
        %v359 = vunpack.c.l.b16 %v327
        %v360 = vunpack.c.h.b16 %v327
        %v361 = vunpack.c.l.b16 %v328
        %v362 = vunpack.c.h.b16 %v328
        %v363 = vunpack.c.l.b16 %v329
        %v364 = vunpack.c.h.b16 %v329
        %v365 = vunpack.c.l.b16 %v330
        %v366 = vunpack.c.h.b16 %v330
        %v367 = vpack.c.b16 %v353, %v351
        %v368 = vpack.c.b16 %v354, %v352
        %v369 = vpack.c.b16 %v357, %v355
        %v370 = vpack.c.b16 %v358, %v356
        %v371 = vpack.c.b16 %v361, %v359
        %v372 = vpack.c.b16 %v362, %v360
        %v373 = vpack.c.b16 %v365, %v363
        %v374 = vpack.c.b16 %v366, %v364
        %vm383 = vcmask 523264
        %v385 = vsel %vm383, %v316, 0
        %v388 = vsel %vm383, %v317, 0
        %v391 = vsel %vm383, %v318, 0
        %v394 = vsel %vm383, %v319, 0
        %v397 = vsel %vm383, %v320, 0
        %v400 = vsel %vm383, %v321, 0
        %v403 = vsel %vm383, %v322, 0
        %405 = vmatprep.subr.bf16.mxu0 0
        %406 = vmatpush1.bf16.msra.mxu0 0
        %407 = vmatprep.subr.bf16.mxu0 0
        %408 = vmatpush1.bf16.msra.mxu0 0
        %409 = vmatprep.subr.bf16.mxu0 0
        %410 = vmatpush1.bf16.msra.mxu0 0
        %411 = vmatprep.subr.bf16.mxu0 0
        %412 = vmatpush1.bf16.msra.mxu0 0
        %413 = vmatprep.subr.bf16.mxu0 %v374
        %414 = vmatpush1.bf16.msra.mxu0 %v373
        %415 = vmatprep.subr.bf16.mxu0 %v372
        %416 = vmatpush1.bf16.msra.mxu0 %v371
        %417 = vmatprep.subr.bf16.mxu0 %v370
        %418 = vmatpush1.bf16.msra.mxu0 %v369
        %419 = vmatprep.subr.bf16.mxu0 %v368
        %420 = vmatpush1.bf16.msra.mxu0 %v367
        %421 = vmatprep.subr.bf16.mxu0 0
        %422 = vmatpush2.bf16.msra.mxu0 0
        %423 = vmatprep.subr.bf16.mxu0 0
        %424 = vmatpush2.bf16.msra.mxu0 0
        %425 = vmatprep.subr.bf16.mxu0 0
        %426 = vmatpush2.bf16.msra.mxu0 0
        %427 = vmatprep.subr.bf16.mxu0 0
        %428 = vmatpush2.bf16.msra.mxu0 0
        %429 = vmatprep.subr.bf16.mxu0 0
        %430 = vmatpush2.bf16.msra.mxu0 0
        %431 = vmatprep.subr.bf16.mxu0 0
        %432 = vmatpush2.bf16.msra.mxu0 0
        %433 = vmatprep.subr.bf16.mxu0 0
        %434 = vmatpush2.bf16.msra.mxu0 0
        %435 = vmatprep.subr.bf16.mxu0 0
        %436 = vmatpush2.bf16.msra.mxu0 0
        %437 = vmatprep.mubr.bf16.mxu0 0
        %438 = vmatmul.mubr.bf16.gmra.mxu0 %v385
        %v439 = vpop.f32.mrf.mxu0
        %v440 = vadd.f32 %v336, %v439
        %v441 = vpop.f32.mrf.mxu0
        %v442 = vadd.f32 %v340, %v441
        %v443 = vpop.f32.mrf.mxu0
        %v444 = vadd.f32 %v336, %v443
        %v445 = vpop.f32.mrf.mxu0
        %v446 = vadd.f32 %v340, %v445
        %447 = vmatprep.mubr.bf16.mxu0 0
        %448 = vmatmul.mubr.bf16.gmra.mxu0 %v388
        %v449 = vpop.f32.mrf.mxu0
        %v450 = vadd.f32 %v336, %v449
        %v451 = vpop.f32.mrf.mxu0
        %v452 = vadd.f32 %v340, %v451
        %v453 = vpop.f32.mrf.mxu0
        %v454 = vadd.f32 %v336, %v453
        %v455 = vpop.f32.mrf.mxu0
        %v456 = vadd.f32 %v340, %v455
        %457 = vmatprep.mubr.bf16.mxu0 0
        %458 = vmatmul.mubr.bf16.gmra.mxu0 %v391
        %v459 = vpop.f32.mrf.mxu0
        %v460 = vadd.f32 %v336, %v459
        %v461 = vpop.f32.mrf.mxu0
        %v462 = vadd.f32 %v340, %v461
        %v463 = vpop.f32.mrf.mxu0
        %v464 = vadd.f32 %v336, %v463
        %v465 = vpop.f32.mrf.mxu0
        %v466 = vadd.f32 %v340, %v465
        %467 = vmatprep.mubr.bf16.mxu0 0
        %468 = vmatmul.mubr.bf16.gmra.mxu0 %v394
        %v469 = vpop.f32.mrf.mxu0
        %v470 = vadd.f32 %v336, %v469
        %v471 = vpop.f32.mrf.mxu0
        %v472 = vadd.f32 %v340, %v471
        %v473 = vpop.f32.mrf.mxu0
        %v474 = vadd.f32 %v336, %v473
        %v475 = vpop.f32.mrf.mxu0
        %v476 = vadd.f32 %v340, %v475
        %477 = vmatprep.mubr.bf16.mxu0 0
        %478 = vmatmul.mubr.bf16.gmra.mxu0 %v397
        %v479 = vpop.f32.mrf.mxu0
        %v480 = vadd.f32 %v336, %v479
        %v481 = vpop.f32.mrf.mxu0
        %v482 = vadd.f32 %v340, %v481
        %v483 = vpop.f32.mrf.mxu0
        %v484 = vadd.f32 %v336, %v483
        %v485 = vpop.f32.mrf.mxu0
        %v486 = vadd.f32 %v340, %v485
        %487 = vmatprep.mubr.bf16.mxu0 0
        %488 = vmatmul.mubr.bf16.gmra.mxu0 %v400
        %v489 = vpop.f32.mrf.mxu0
        %v490 = vadd.f32 %v336, %v489
        %v491 = vpop.f32.mrf.mxu0
        %v492 = vadd.f32 %v340, %v491
        %v493 = vpop.f32.mrf.mxu0
        %v494 = vadd.f32 %v336, %v493
        %v495 = vpop.f32.mrf.mxu0
        %v496 = vadd.f32 %v340, %v495
        %497 = vmatprep.mubr.bf16.mxu0 0
        %498 = vmatmul.mubr.bf16.gmra.mxu0 %v403
        %v499 = vpop.f32.mrf.mxu0
        %v500 = vadd.f32 %v336, %v499
        %v501 = vpop.f32.mrf.mxu0
        %v502 = vadd.f32 %v340, %v501
        %v503 = vpop.f32.mrf.mxu0
        %v504 = vpop.f32.mrf.mxu0
        %505 = vdwg.mxu0
        %v506 = vmul.f32 %v440, 0.2
        %v507 = vmul.f32 %v442, 0.2
        %v508 = vmul.f32 %v444, 0.2
        %v509 = vmul.f32 %v446, 0.2
        %v510 = vmul.f32 %v450, 0.2
        %v511 = vmul.f32 %v452, 0.2
        %v512 = vmul.f32 %v454, 0.2
        %v513 = vmul.f32 %v456, 0.2
        %v514 = vmul.f32 %v460, 0.2
        %v515 = vmul.f32 %v462, 0.2
        %v516 = vmul.f32 %v464, 0.2
        %v517 = vmul.f32 %v466, 0.2
        %v518 = vmul.f32 %v470, 0.2
        %v519 = vmul.f32 %v472, 0.2
        %v520 = vmul.f32 %v474, 0.2
        %v521 = vmul.f32 %v476, 0.2
        %v522 = vmul.f32 %v480, 0.2
        %v523 = vmul.f32 %v482, 0.2
        %v524 = vmul.f32 %v484, 0.2
        %v525 = vmul.f32 %v486, 0.2
        %v526 = vmul.f32 %v490, 0.2
        %v527 = vmul.f32 %v492, 0.2
        %v528 = vmul.f32 %v494, 0.2
        %v529 = vmul.f32 %v496, 0.2
        %v530 = vmul.f32 %v500, 0.2
        %v531 = vmul.f32 %v502, 0.2
        %v532 = vmax.f32 %v440, %v506
        %v533 = vmax.f32 %v442, %v507
        %v534 = vmax.f32 %v444, %v508
        %v535 = vmax.f32 %v446, %v509
        %v536 = vmax.f32 %v450, %v510
        %v537 = vmax.f32 %v452, %v511
        %v538 = vmax.f32 %v454, %v512
        %v539 = vmax.f32 %v456, %v513
        %v540 = vmax.f32 %v460, %v514
        %v541 = vmax.f32 %v462, %v515
        %v542 = vmax.f32 %v464, %v516
        %v543 = vmax.f32 %v466, %v517
        %v544 = vmax.f32 %v470, %v518
        %v545 = vmax.f32 %v472, %v519
        %v546 = vmax.f32 %v474, %v520
        %v547 = vmax.f32 %v476, %v521
        %v548 = vmax.f32 %v480, %v522
        %v549 = vmax.f32 %v482, %v523
        %v550 = vmax.f32 %v484, %v524
        %v551 = vmax.f32 %v486, %v525
        %v552 = vmax.f32 %v490, %v526
        %v553 = vmax.f32 %v492, %v527
        %v554 = vmax.f32 %v494, %v528
        %v555 = vmax.f32 %v496, %v529
        %v556 = vmax.f32 %v500, %v530
        %v557 = vmax.f32 %v502, %v531
        %v558 = vpack.c.bf16 %v534, %v532
        %v559 = vpack.c.bf16 %v535, %v533
        %v560 = vpack.c.bf16 %v538, %v536
        %v561 = vpack.c.bf16 %v539, %v537
        %v562 = vpack.c.bf16 %v542, %v540
        %v563 = vpack.c.bf16 %v543, %v541
        %v564 = vpack.c.bf16 %v546, %v544
        %v565 = vpack.c.bf16 %v547, %v545
        %v566 = vpack.c.bf16 %v550, %v548
        %v567 = vpack.c.bf16 %v551, %v549
        %v568 = vpack.c.bf16 %v554, %v552
        %v569 = vpack.c.bf16 %v555, %v553
        %v570 = vpack.c.bf16 %v556, %v556
        %v571 = vpack.c.bf16 %v557, %v557
        %v572 = vld [vmem:[%s3] sm:$0xf]
        %v573 = vld [vmem:[%s3 + $0x4] sm:$0xf]
        %v574 = vld [vmem:[%s3 + $0x8] sm:$0xf]
        %v575 = vld [vmem:[%s3 + $0xc] sm:$0xf]
        %v576 = vld [vmem:[%s3 + $0x10] sm:$0xf]
        %v577 = vld [vmem:[%s3 + $0x14] sm:$0xf]
        %v578 = vld [vmem:[%s3 + $0x18] sm:$0xf]
        %v579 = vld [vmem:[%s3 + $0x1c] sm:$0xf]
        %v580 = vld [vmem:[%s3 + $0x20] sm:$0xf]
        %v581 = vld [vmem:[%s3 + $0x24] sm:$0xf]
        %v582 = vld [vmem:[%s3 + $0x28] sm:$0xf]
        %v583 = vld [vmem:[%s3 + $0x2c] sm:$0xf]
        %v584 = vld [vmem:[%s3 + $0x30] sm:$0xf]
        %v585 = vld [vmem:[%s3 + $0x34] sm:$0xf]
        %v586 = vld [vmem:[%s3 + $0x38] sm:$0xf]
        %v587 = vld [vmem:[%s3 + $0x3c] sm:$0xf]
        %v588 = vld [vmem:[%s3 + $0x40] sm:$0xf]
        %v589 = vld [vmem:[%s3 + $0x44] sm:$0xf]
        %v590 = vld [vmem:[%s3 + $0x48] sm:$0xf]
        %v591 = vld [vmem:[%s3 + $0x4c] sm:$0xf]
        %v592 = vld [vmem:[%s3 + $0x50] sm:$0xf]
        %v593 = vld [vmem:[%s3 + $0x54] sm:$0xf]
        %v594 = vld [vmem:[%s3 + $0x58] sm:$0xf]
        %v595 = vld [vmem:[%s3 + $0x5c] sm:$0xf]
        %v596 = vld [vmem:[%s3 + $0x60] sm:$0xf]
        %v597 = vld [vmem:[%s3 + $0x64] sm:$0xf]
        %v598 = vld [vmem:[%s3 + $0x68] sm:$0xf]
        %v599 = vld [vmem:[%s3 + $0x6c] sm:$0xf]
        %v600 = vld [vmem:[%s3 + $0x70] sm:$0xf]
        %v601 = vld [vmem:[%s3 + $0x74] sm:$0xf]
        %v602 = vld [vmem:[%s3 + $0x78] sm:$0xf]
        %v603 = vld [vmem:[%s3 + $0x7c] sm:$0xf]
        %v604 = vld [vmem:[%s4] sm:$0x1]
        %v606 = vlaneseq
        %v607 = vshrl.u32 %v606, 7
        %v608 = vsub.s32 0, %v607
        %v609 = vrot.slane %v604, %v608
        %v643 = vunpack.c.l.b16 %v572
        %v644 = vunpack.c.l.b16 %v573
        %v645 = vunpack.c.l.b16 %v574
        %v646 = vunpack.c.l.b16 %v575
        %v647 = vunpack.c.l.b16 %v576
        %v648 = vunpack.c.l.b16 %v577
        %v649 = vunpack.c.l.b16 %v578
        %v650 = vunpack.c.l.b16 %v579
        %v651 = vunpack.c.l.b16 %v580
        %v652 = vunpack.c.l.b16 %v581
        %v653 = vunpack.c.l.b16 %v582
        %v654 = vunpack.c.l.b16 %v583
        %v655 = vunpack.c.l.b16 %v584
        %v656 = vunpack.c.l.b16 %v585
        %v657 = vunpack.c.l.b16 %v586
        %v658 = vunpack.c.l.b16 %v587
        %v659 = vunpack.c.l.b16 %v588
        %v660 = vunpack.c.l.b16 %v589
        %v661 = vunpack.c.l.b16 %v590
        %v662 = vunpack.c.l.b16 %v591
        %v663 = vunpack.c.l.b16 %v592
        %v664 = vunpack.c.l.b16 %v593
        %v665 = vunpack.c.l.b16 %v594
        %v666 = vunpack.c.l.b16 %v595
        %v667 = vunpack.c.l.b16 %v596
        %v668 = vunpack.c.l.b16 %v597
        %v669 = vunpack.c.l.b16 %v598
        %v670 = vunpack.c.l.b16 %v599
        %v671 = vunpack.c.l.b16 %v600
        %v672 = vunpack.c.l.b16 %v601
        %v673 = vunpack.c.l.b16 %v602
        %v674 = vunpack.c.l.b16 %v603
        %v675 = vpack.c.b16 %v644, %v643
        %v676 = vpack.c.b16 %v646, %v645
        %v677 = vpack.c.b16 %v648, %v647
        %v678 = vpack.c.b16 %v650, %v649
        %v679 = vpack.c.b16 %v652, %v651
        %v680 = vpack.c.b16 %v654, %v653
        %v681 = vpack.c.b16 %v656, %v655
        %v682 = vpack.c.b16 %v658, %v657
        %v683 = vpack.c.b16 %v660, %v659
        %v684 = vpack.c.b16 %v662, %v661
        %v685 = vpack.c.b16 %v664, %v663
        %v686 = vpack.c.b16 %v666, %v665
        %v687 = vpack.c.b16 %v668, %v667
        %v688 = vpack.c.b16 %v670, %v669
        %v689 = vpack.c.b16 %v672, %v671
        %v690 = vpack.c.b16 %v674, %v673
        %707 = vmatprep.subr.bf16.mxu0 0
        %708 = vmatpush1.bf16.msra.mxu0 %v682
        %709 = vmatprep.subr.bf16.mxu0 0
        %710 = vmatpush1.bf16.msra.mxu0 %v681
        %711 = vmatprep.subr.bf16.mxu0 0
        %712 = vmatpush1.bf16.msra.mxu0 %v680
        %713 = vmatprep.subr.bf16.mxu0 0
        %714 = vmatpush1.bf16.msra.mxu0 %v679
        %715 = vmatprep.subr.bf16.mxu0 0
        %716 = vmatpush1.bf16.msra.mxu0 %v678
        %717 = vmatprep.subr.bf16.mxu0 0
        %718 = vmatpush1.bf16.msra.mxu0 %v677
        %719 = vmatprep.subr.bf16.mxu0 0
        %720 = vmatpush1.bf16.msra.mxu0 %v676
        %721 = vmatprep.subr.bf16.mxu0 0
        %722 = vmatpush1.bf16.msra.mxu0 %v675
        %723 = vmatprep.subr.bf16.mxu0 0
        %724 = vmatpush2.bf16.msra.mxu0 %v690
        %725 = vmatprep.subr.bf16.mxu0 0
        %726 = vmatpush2.bf16.msra.mxu0 %v689
        %727 = vmatprep.subr.bf16.mxu0 0
        %728 = vmatpush2.bf16.msra.mxu0 %v688
        %729 = vmatprep.subr.bf16.mxu0 0
        %730 = vmatpush2.bf16.msra.mxu0 %v687
        %731 = vmatprep.subr.bf16.mxu0 0
        %732 = vmatpush2.bf16.msra.mxu0 %v686
        %733 = vmatprep.subr.bf16.mxu0 0
        %734 = vmatpush2.bf16.msra.mxu0 %v685
        %735 = vmatprep.subr.bf16.mxu0 0
        %736 = vmatpush2.bf16.msra.mxu0 %v684
        %737 = vmatprep.subr.bf16.mxu0 0
        %738 = vmatpush2.bf16.msra.mxu0 %v683
        %739 = vmatprep.mubr.bf16.mxu0 %v559
        %740 = vmatmul.mubr.bf16.gmra.mxu0 %v558
        %v741 = vpop.f32.mrf.mxu0
        %v742 = vadd.f32 %v609, %v741
        %v743 = vpop.f32.mrf.mxu0
        %v744 = vpop.f32.mrf.mxu0
        %v745 = vadd.f32 %v609, %v744
        %v746 = vpop.f32.mrf.mxu0
        %747 = vmatprep.mubr.bf16.mxu0 %v561
        %748 = vmatmul.mubr.bf16.gmra.mxu0 %v560
        %v749 = vpop.f32.mrf.mxu0
        %v750 = vadd.f32 %v609, %v749
        %v751 = vpop.f32.mrf.mxu0
        %v752 = vpop.f32.mrf.mxu0
        %v753 = vadd.f32 %v609, %v752
        %v754 = vpop.f32.mrf.mxu0
        %755 = vmatprep.mubr.bf16.mxu0 %v563
        %756 = vmatmul.mubr.bf16.gmra.mxu0 %v562
        %v757 = vpop.f32.mrf.mxu0
        %v758 = vadd.f32 %v609, %v757
        %v759 = vpop.f32.mrf.mxu0
        %v760 = vpop.f32.mrf.mxu0
        %v761 = vadd.f32 %v609, %v760
        %v762 = vpop.f32.mrf.mxu0
        %763 = vmatprep.mubr.bf16.mxu0 %v565
        %764 = vmatmul.mubr.bf16.gmra.mxu0 %v564
        %v765 = vpop.f32.mrf.mxu0
        %v766 = vadd.f32 %v609, %v765
        %v767 = vpop.f32.mrf.mxu0
        %v768 = vpop.f32.mrf.mxu0
        %v769 = vadd.f32 %v609, %v768
        %v770 = vpop.f32.mrf.mxu0
        %771 = vmatprep.mubr.bf16.mxu0 %v567
        %772 = vmatmul.mubr.bf16.gmra.mxu0 %v566
        %v773 = vpop.f32.mrf.mxu0
        %v774 = vadd.f32 %v609, %v773
        %v775 = vpop.f32.mrf.mxu0
        %v776 = vpop.f32.mrf.mxu0
        %v777 = vadd.f32 %v609, %v776
        %v778 = vpop.f32.mrf.mxu0
        %779 = vmatprep.mubr.bf16.mxu0 %v569
        %780 = vmatmul.mubr.bf16.gmra.mxu0 %v568
        %v781 = vpop.f32.mrf.mxu0
        %v782 = vadd.f32 %v609, %v781
        %v783 = vpop.f32.mrf.mxu0
        %v784 = vpop.f32.mrf.mxu0
        %v785 = vadd.f32 %v609, %v784
        %v786 = vpop.f32.mrf.mxu0
        %787 = vmatprep.mubr.bf16.mxu0 %v571
        %788 = vmatmul.mubr.bf16.gmra.mxu0 %v570
        %v789 = vpop.f32.mrf.mxu0
        %v790 = vadd.f32 %v609, %v789
        %v791 = vpop.f32.mrf.mxu0
        %v792 = vpop.f32.mrf.mxu0
        %v793 = vpop.f32.mrf.mxu0
        %794 = vdwg.mxu0
        %v795 = vmul.f32 %v742, 0.2
        %v796 = vmul.f32 %v745, 0.2
        %v797 = vmul.f32 %v750, 0.2
        %v798 = vmul.f32 %v753, 0.2
        %v799 = vmul.f32 %v758, 0.2
        %v800 = vmul.f32 %v761, 0.2
        %v801 = vmul.f32 %v766, 0.2
        %v802 = vmul.f32 %v769, 0.2
        %v803 = vmul.f32 %v774, 0.2
        %v804 = vmul.f32 %v777, 0.2
        %v805 = vmul.f32 %v782, 0.2
        %v806 = vmul.f32 %v785, 0.2
        %v807 = vmul.f32 %v790, 0.2
        %v808 = vmax.f32 %v742, %v795
        %v809 = vmax.f32 %v745, %v796
        %v810 = vmax.f32 %v750, %v797
        %v811 = vmax.f32 %v753, %v798
        %v812 = vmax.f32 %v758, %v799
        %v813 = vmax.f32 %v761, %v800
        %v814 = vmax.f32 %v766, %v801
        %v815 = vmax.f32 %v769, %v802
        %v816 = vmax.f32 %v774, %v803
        %v817 = vmax.f32 %v777, %v804
        %v818 = vmax.f32 %v782, %v805
        %v819 = vmax.f32 %v785, %v806
        %v820 = vmax.f32 %v790, %v807
        %v821 = vld [vmem:[%s5] sm:$0x1]
        %v823 = vlaneseq
        %v824 = vshrl.u32 %v823, 7
        %v825 = vsub.s32 0, %v824
        %v826 = vrot.slane %v821, %v825
        %v828 = vmul.f32 %v808, %v826
        %v829 = vmul.f32 %v809, %v826
        %v830 = vmul.f32 %v810, %v826
        %v831 = vmul.f32 %v811, %v826
        %v832 = vmul.f32 %v812, %v826
        %v833 = vmul.f32 %v813, %v826
        %v834 = vmul.f32 %v814, %v826
        %v835 = vmul.f32 %v815, %v826
        %v836 = vmul.f32 %v816, %v826
        %v837 = vmul.f32 %v817, %v826
        %v838 = vmul.f32 %v818, %v826
        %v839 = vmul.f32 %v819, %v826
        %v840 = vmul.f32 %v820, %v826
        %841 = vadd.xlane.f32.xlu0 %v828
        %v842 = vpop.xlane.xlu0 %841
        %843 = vadd.xlane.f32.xlu0 %v829
        %v844 = vpop.xlane.xlu0 %843
        %845 = vadd.xlane.f32.xlu0 %v830
        %v846 = vpop.xlane.xlu0 %845
        %847 = vadd.xlane.f32.xlu0 %v831
        %v848 = vpop.xlane.xlu0 %847
        %849 = vadd.xlane.f32.xlu0 %v832
        %v850 = vpop.xlane.xlu0 %849
        %851 = vadd.xlane.f32.xlu0 %v833
        %v852 = vpop.xlane.xlu0 %851
        %853 = vadd.xlane.f32.xlu0 %v834
        %v854 = vpop.xlane.xlu0 %853
        %855 = vadd.xlane.f32.xlu0 %v835
        %v856 = vpop.xlane.xlu0 %855
        %857 = vadd.xlane.f32.xlu0 %v836
        %v858 = vpop.xlane.xlu0 %857
        %859 = vadd.xlane.f32.xlu0 %v837
        %v860 = vpop.xlane.xlu0 %859
        %861 = vadd.xlane.f32.xlu0 %v838
        %v862 = vpop.xlane.xlu0 %861
        %863 = vadd.xlane.f32.xlu0 %v839
        %v864 = vpop.xlane.xlu0 %863
        %865 = vadd.xlane.f32.xlu0 %v840
        %v866 = vpop.xlane.xlu0 %865
        %v867 = vld [vmem:[#allocation2] sm:$0x1]
        %v869 = vlaneseq
        %v870 = vshrl.u32 %v869, 7
        %v871 = vsub.s32 0, %v870
        %v872 = vrot.slane %v867, %v871
        %v874 = vadd.f32 %v842, %v872
        %v875 = vadd.f32 %v844, %v872
        %v876 = vadd.f32 %v846, %v872
        %v877 = vadd.f32 %v848, %v872
        %v878 = vadd.f32 %v850, %v872
        %v879 = vadd.f32 %v852, %v872
        %v880 = vadd.f32 %v854, %v872
        %v881 = vadd.f32 %v856, %v872
        %v882 = vadd.f32 %v858, %v872
        %v883 = vadd.f32 %v860, %v872
        %v884 = vadd.f32 %v862, %v872
        %v885 = vadd.f32 %v864, %v872
        %v886 = vadd.f32 %v866, %v872
        %v887 = vxor.u32 %v874, 2147483648
        %v888 = vxor.u32 %v875, 2147483648
        %v889 = vxor.u32 %v876, 2147483648
        %v890 = vxor.u32 %v877, 2147483648
        %v891 = vxor.u32 %v878, 2147483648
        %v892 = vxor.u32 %v879, 2147483648
        %v893 = vxor.u32 %v880, 2147483648
        %v894 = vxor.u32 %v881, 2147483648
        %v895 = vxor.u32 %v882, 2147483648
        %v896 = vxor.u32 %v883, 2147483648
        %v897 = vxor.u32 %v884, 2147483648
        %v898 = vxor.u32 %v885, 2147483648
        %v899 = vxor.u32 %v886, 2147483648
        %v900 = vmul.f32 %v887, 1.442695
        %v901 = vpow.pop %v900
        %v902 = vmul.f32 %v888, 1.442695
        %v903 = vpow.pop %v902
        %v904 = vmul.f32 %v889, 1.442695
        %v905 = vpow.pop %v904
        %v906 = vmul.f32 %v890, 1.442695
        %v907 = vpow.pop %v906
        %v908 = vmul.f32 %v891, 1.442695
        %v909 = vpow.pop %v908
        %v910 = vmul.f32 %v892, 1.442695
        %v911 = vpow.pop %v910
        %v912 = vmul.f32 %v893, 1.442695
        %v913 = vpow.pop %v912
        %v914 = vmul.f32 %v894, 1.442695
        %v915 = vpow.pop %v914
        %v916 = vmul.f32 %v895, 1.442695
        %v917 = vpow.pop %v916
        %v918 = vmul.f32 %v896, 1.442695
        %v919 = vpow.pop %v918
        %v920 = vmul.f32 %v897, 1.442695
        %v921 = vpow.pop %v920
        %v922 = vmul.f32 %v898, 1.442695
        %v923 = vpow.pop %v922
        %v924 = vmul.f32 %v899, 1.442695
        %v925 = vpow.pop %v924
        %v926 = vadd.f32 %v901, 1.0
        %v927 = vadd.f32 %v903, 1.0
        %v928 = vadd.f32 %v905, 1.0
        %v929 = vadd.f32 %v907, 1.0
        %v930 = vadd.f32 %v909, 1.0
        %v931 = vadd.f32 %v911, 1.0
        %v932 = vadd.f32 %v913, 1.0
        %v933 = vadd.f32 %v915, 1.0
        %v934 = vadd.f32 %v917, 1.0
        %v935 = vadd.f32 %v919, 1.0
        %v936 = vadd.f32 %v921, 1.0
        %v937 = vadd.f32 %v923, 1.0
        %v938 = vadd.f32 %v925, 1.0
        %v939 = vrcp.pop %v926
        %v940 = vmul.f32 1.0, %v939
        %v941 = vrcp.pop %v927
        %v942 = vmul.f32 1.0, %v941
        %v943 = vrcp.pop %v928
        %v944 = vmul.f32 1.0, %v943
        %v945 = vrcp.pop %v929
        %v946 = vmul.f32 1.0, %v945
        %v947 = vrcp.pop %v930
        %v948 = vmul.f32 1.0, %v947
        %v949 = vrcp.pop %v931
        %v950 = vmul.f32 1.0, %v949
        %v951 = vrcp.pop %v932
        %v952 = vmul.f32 1.0, %v951
        %v953 = vrcp.pop %v933
        %v954 = vmul.f32 1.0, %v953
        %v955 = vrcp.pop %v934
        %v956 = vmul.f32 1.0, %v955
        %v957 = vrcp.pop %v935
        %v958 = vmul.f32 1.0, %v957
        %v959 = vrcp.pop %v936
        %v960 = vmul.f32 1.0, %v959
        %v961 = vrcp.pop %v937
        %v962 = vmul.f32 1.0, %v961
        %v963 = vrcp.pop %v938
        %v964 = vmul.f32 1.0, %v963
        %vm965 = vcmask 7168
        %966 = vst.msk [vmem:[%s282] sm:$0xff] %vm965, %v940
        %967 = vst.msk [vmem:[%s282 + $0x8] sm:$0xff] %vm965, %v942
        %968 = vst.msk [vmem:[%s282 + $0x10] sm:$0xff] %vm965, %v944
        %969 = vst.msk [vmem:[%s282 + $0x18] sm:$0xff] %vm965, %v946
        %970 = vst.msk [vmem:[%s282 + $0x20] sm:$0xff] %vm965, %v948
        %971 = vst.msk [vmem:[%s282 + $0x28] sm:$0xff] %vm965, %v950
        %972 = vst.msk [vmem:[%s282 + $0x30] sm:$0xff] %vm965, %v952
        %973 = vst.msk [vmem:[%s282 + $0x38] sm:$0xff] %vm965, %v954
        %974 = vst.msk [vmem:[%s282 + $0x40] sm:$0xff] %vm965, %v956
        %975 = vst.msk [vmem:[%s282 + $0x48] sm:$0xff] %vm965, %v958
        %976 = vst.msk [vmem:[%s282 + $0x50] sm:$0xff] %vm965, %v960
        %977 = vst.msk [vmem:[%s282 + $0x58] sm:$0xff] %vm965, %v962
        %978 = vst.msk [vmem:[%s282 + $0x60] sm:$0xff] %vm965, %v964
        %s979 = sand.u32 %s180, 1
        %s980 = sand.u32 %s180, 1
        %s981 = smul.addr %s980, 104
        %s982 = scalar_lea.vmem [#allocation3], %s981
        // Predicated region
        $region49: #{tpu_custom_call.1} parent=47 // pred_check
          %p983 = pneg %p190
        $region50: #{tpu_custom_call.1} parent=47 // pred_check_branch
          %985 = sbr.rel (%p983) target = $region52
        $region51: #{tpu_custom_call.1} parent=47 // pred_region
          %s986 = smul.u32 13, %s20
          %s987 = ssub.s32 25, %s986
          %p988 = scmp.lt.s32.totalorder %s987, 13
          %s989 = scalar_select %p988, %s987, 13
          %s990 = smul.u32 128, %s989
          %p991 = scmp.ne.s32.totalorder 0, %s990
          %s992 = smul.addr %s986, 8
          %s993 = scalar_lea.vmem %s7, %s992
          // Predicated region
          $region53: #{tpu_custom_call.1} parent=51 // pred_check
            %p994 = pneg %p991
          $region54: #{tpu_custom_call.1} parent=51 // pred_check_branch
            %996 = sbr.rel (%p994) target = $region56
          $region55: #{tpu_custom_call.1} parent=51 // pred_region
            // Predicated region
            $region57: #{tpu_custom_call.1} parent=55 // pred_check
              _
            $region58: #{tpu_custom_call.1} parent=55 // pred_check_branch
              %998 = sbr.rel (0) target = $region60
            $region59: #{tpu_custom_call.1} parent=55 // pred_region
              // Predicated region
              $region79: #{tpu_custom_call.1} parent=59 // pred_check
                _
              $region80: #{tpu_custom_call.1} parent=59 // pred_check_branch
                %1073 = sbr.rel (0) target = $region82
              $region81: #{tpu_custom_call.1} parent=59 // pred_region
                %s1074 = sdiv.u32.pop %s989, 13
                %s1075 = srem.u32.pop %s989, 13
                // While loop
                $region83: #{tpu_custom_call.1} parent=81 // loop_pre_header
                  _
                $region84: #{tpu_custom_call.1} parent=81 // loop_header
                  %s1077 = sphi 0, %s1079
                  %p1078 = scmp.ge.s32.totalorder %s1077, %s1074
                  %s1082 = sphi 0, %s1113
                  %s1083 = sphi %s982, %s1116
                  %s1084 = sphi %s993, %s1117
                $region85: #{tpu_custom_call.1} parent=81 // loop_header_branch
                  %1081 = sbr.rel (%p1078) target = $region89
                $region86: #{tpu_custom_call.1} parent=81 // loop_body
                  %v1085 = vld [vmem:[%s1083] sm:$0xff]
                  %1086 = vst [vmem:[%s1084] sm:$0xff] %v1085
                  %v1087 = vld [vmem:[%s1083 + $0x8] sm:$0xff]
                  %1088 = vst [vmem:[%s1084 + $0x8] sm:$0xff] %v1087
                  %v1089 = vld [vmem:[%s1083 + $0x10] sm:$0xff]
                  %1090 = vst [vmem:[%s1084 + $0x10] sm:$0xff] %v1089
                  %v1091 = vld [vmem:[%s1083 + $0x18] sm:$0xff]
                  %1092 = vst [vmem:[%s1084 + $0x18] sm:$0xff] %v1091
                  %v1093 = vld [vmem:[%s1083 + $0x20] sm:$0xff]
                  %1094 = vst [vmem:[%s1084 + $0x20] sm:$0xff] %v1093
                  %v1095 = vld [vmem:[%s1083 + $0x28] sm:$0xff]
                  %1096 = vst [vmem:[%s1084 + $0x28] sm:$0xff] %v1095
                  %v1097 = vld [vmem:[%s1083 + $0x30] sm:$0xff]
                  %1098 = vst [vmem:[%s1084 + $0x30] sm:$0xff] %v1097
                  %v1099 = vld [vmem:[%s1083 + $0x38] sm:$0xff]
                  %1100 = vst [vmem:[%s1084 + $0x38] sm:$0xff] %v1099
                  %v1101 = vld [vmem:[%s1083 + $0x40] sm:$0xff]
                  %1102 = vst [vmem:[%s1084 + $0x40] sm:$0xff] %v1101
                  %v1103 = vld [vmem:[%s1083 + $0x48] sm:$0xff]
                  %1104 = vst [vmem:[%s1084 + $0x48] sm:$0xff] %v1103
                  %v1105 = vld [vmem:[%s1083 + $0x50] sm:$0xff]
                  %1106 = vst [vmem:[%s1084 + $0x50] sm:$0xff] %v1105
                  %v1107 = vld [vmem:[%s1083 + $0x58] sm:$0xff]
                  %1108 = vst [vmem:[%s1084 + $0x58] sm:$0xff] %v1107
                  %v1109 = vld [vmem:[%s1083 + $0x60] sm:$0xff]
                  %1110 = vst [vmem:[%s1084 + $0x60] sm:$0xff] %v1109
                  %s1111 = sadd.s32 1, %s1082
                  %p1112 = scmp.ge.s32.totalorder %s1111, %s1074
                  %s1113 = scalar_select %p1112, 0, %s1111
                  %s1114 = smul.u32 %s1113, 104
                  %s1115 = smul.u32 %s1113, 104
                  %s1116 = scalar_lea.vmem %s982, %s1114 [#allocation3]
                  %s1117 = scalar_lea.vmem %s993, %s1115
                $region87: #{tpu_custom_call.1} parent=81 // loop_footer
                  %s1079 = sadd.s32 %s1077, 1
                $region88: #{tpu_custom_call.1} parent=81 // loop_footer_branch
                  %1076 = sbr.rel target = $region84
                $region89: #{tpu_custom_call.1} parent=81 // loop_exit
                  _
                %s1118 = sdiv.u32.pop %s989, 13
                %s1119 = srem.u32.pop %s989, 13
                %s1120 = smul.u32 %s1118, 13
                %s1121 = smul.u32 8, %s1120
                %s1122 = scalar_lea.vmem %s982, %s1121 [#allocation3]
                %s1123 = smul.u32 8, %s1120
                %s1124 = scalar_lea.vmem %s993, %s1123
                // While loop
                $region90: #{tpu_custom_call.1} parent=81 // loop_pre_header
                  _
                $region91: #{tpu_custom_call.1} parent=81 // loop_header
                  %s1126 = sphi 0, %s1128
                  %p1127 = scmp.ge.s32.totalorder %s1126, %s1119
                  %s1131 = sphi 0, %s1138
                  %s1132 = sphi %s1122, %s1141
                  %s1133 = sphi %s1124, %s1142
                $region92: #{tpu_custom_call.1} parent=81 // loop_header_branch
                  %1130 = sbr.rel (%p1127) target = $region96
                $region93: #{tpu_custom_call.1} parent=81 // loop_body
                  %v1134 = vld [vmem:[%s1132] sm:$0xff]
                  %1135 = vst [vmem:[%s1133] sm:$0xff] %v1134
                  %s1136 = sadd.s32 1, %s1131
                  %p1137 = scmp.ge.s32.totalorder %s1136, %s1119
                  %s1138 = scalar_select %p1137, 0, %s1136
                  %s1139 = smul.u32 %s1138, 8
                  %s1140 = smul.u32 %s1138, 8
                  %s1141 = scalar_lea.vmem %s1122, %s1139 [#allocation3]
                  %s1142 = scalar_lea.vmem %s1124, %s1140
                $region94: #{tpu_custom_call.1} parent=81 // loop_footer
                  %s1128 = sadd.s32 %s1126, 1
                $region95: #{tpu_custom_call.1} parent=81 // loop_footer_branch
                  %1125 = sbr.rel target = $region91
                $region96: #{tpu_custom_call.1} parent=81 // loop_exit
                  _
              $region82: #{tpu_custom_call.1} parent=59 // pred_fallthru
                _
              // Predicated region
              $region97: #{tpu_custom_call.1} parent=59 // pred_check
                _
              $region98: #{tpu_custom_call.1} parent=59 // pred_check_branch
                %1144 = sbr.rel target = $region100
              $region99: #{tpu_custom_call.1} parent=59 // pred_region
                _
              $region100: #{tpu_custom_call.1} parent=59 // pred_fallthru
                _
            $region60: #{tpu_custom_call.1} parent=55 // pred_fallthru
              _
            // Predicated region
            $region61: #{tpu_custom_call.1} parent=55 // pred_check
              _
            $region62: #{tpu_custom_call.1} parent=55 // pred_check_branch
              %1000 = sbr.rel target = $region64
            $region63: #{tpu_custom_call.1} parent=55 // pred_region
              %s1002 = ssub.s32 256, 1
              %s1003 = sdiv.u32.pop %s989, 13
              %s1004 = srem.u32.pop %s989, 13
              // While loop
              $region65: #{tpu_custom_call.1} parent=63 // loop_pre_header
                _
              $region66: #{tpu_custom_call.1} parent=63 // loop_header
                %s1006 = sphi 0, %s1008
                %p1007 = scmp.ge.s32.totalorder %s1006, %s1003
                %s1011 = sphi 0, %s1042
                %s1012 = sphi %s982, %s1045
                %s1013 = sphi %s993, %s1046
              $region67: #{tpu_custom_call.1} parent=63 // loop_header_branch
                %1010 = sbr.rel (%p1007) target = $region71
              $region68: #{tpu_custom_call.1} parent=63 // loop_body
                %v1014 = vld [vmem:[%s1012] sm:%s1002]
                %1015 = vst [vmem:[%s1013] sm:%s1002] %v1014
                %v1016 = vld [vmem:[%s1012 + $0x8] sm:%s1002]
                %1017 = vst [vmem:[%s1013 + $0x8] sm:%s1002] %v1016
                %v1018 = vld [vmem:[%s1012 + $0x10] sm:%s1002]
                %1019 = vst [vmem:[%s1013 + $0x10] sm:%s1002] %v1018
                %v1020 = vld [vmem:[%s1012 + $0x18] sm:%s1002]
                %1021 = vst [vmem:[%s1013 + $0x18] sm:%s1002] %v1020
                %v1022 = vld [vmem:[%s1012 + $0x20] sm:%s1002]
                %1023 = vst [vmem:[%s1013 + $0x20] sm:%s1002] %v1022
                %v1024 = vld [vmem:[%s1012 + $0x28] sm:%s1002]
                %1025 = vst [vmem:[%s1013 + $0x28] sm:%s1002] %v1024
                %v1026 = vld [vmem:[%s1012 + $0x30] sm:%s1002]
                %1027 = vst [vmem:[%s1013 + $0x30] sm:%s1002] %v1026
                %v1028 = vld [vmem:[%s1012 + $0x38] sm:%s1002]
                %1029 = vst [vmem:[%s1013 + $0x38] sm:%s1002] %v1028
                %v1030 = vld [vmem:[%s1012 + $0x40] sm:%s1002]
                %1031 = vst [vmem:[%s1013 + $0x40] sm:%s1002] %v1030
                %v1032 = vld [vmem:[%s1012 + $0x48] sm:%s1002]
                %1033 = vst [vmem:[%s1013 + $0x48] sm:%s1002] %v1032
                %v1034 = vld [vmem:[%s1012 + $0x50] sm:%s1002]
                %1035 = vst [vmem:[%s1013 + $0x50] sm:%s1002] %v1034
                %v1036 = vld [vmem:[%s1012 + $0x58] sm:%s1002]
                %1037 = vst [vmem:[%s1013 + $0x58] sm:%s1002] %v1036
                %v1038 = vld [vmem:[%s1012 + $0x60] sm:%s1002]
                %1039 = vst [vmem:[%s1013 + $0x60] sm:%s1002] %v1038
                %s1040 = sadd.s32 1, %s1011
                %p1041 = scmp.ge.s32.totalorder %s1040, %s1003
                %s1042 = scalar_select %p1041, 0, %s1040
                %s1043 = smul.u32 %s1042, 104
                %s1044 = smul.u32 %s1042, 104
                %s1045 = scalar_lea.vmem %s982, %s1043 [#allocation3]
                %s1046 = scalar_lea.vmem %s993, %s1044
              $region69: #{tpu_custom_call.1} parent=63 // loop_footer
                %s1008 = sadd.s32 %s1006, 1
              $region70: #{tpu_custom_call.1} parent=63 // loop_footer_branch
                %1005 = sbr.rel target = $region66
              $region71: #{tpu_custom_call.1} parent=63 // loop_exit
                _
              %s1047 = sdiv.u32.pop %s989, 13
              %s1048 = srem.u32.pop %s989, 13
              %s1049 = smul.u32 %s1047, 13
              %s1050 = smul.u32 8, %s1049
              %s1051 = scalar_lea.vmem %s982, %s1050 [#allocation3]
              %s1052 = smul.u32 8, %s1049
              %s1053 = scalar_lea.vmem %s993, %s1052
              // While loop
              $region72: #{tpu_custom_call.1} parent=63 // loop_pre_header
                _
              $region73: #{tpu_custom_call.1} parent=63 // loop_header
                %s1055 = sphi 0, %s1057
                %p1056 = scmp.ge.s32.totalorder %s1055, %s1048
                %s1060 = sphi 0, %s1067
                %s1061 = sphi %s1051, %s1070
                %s1062 = sphi %s1053, %s1071
              $region74: #{tpu_custom_call.1} parent=63 // loop_header_branch
                %1059 = sbr.rel (%p1056) target = $region78
              $region75: #{tpu_custom_call.1} parent=63 // loop_body
                %v1063 = vld [vmem:[%s1061] sm:%s1002]
                %1064 = vst [vmem:[%s1062] sm:%s1002] %v1063
                %s1065 = sadd.s32 1, %s1060
                %p1066 = scmp.ge.s32.totalorder %s1065, %s1048
                %s1067 = scalar_select %p1066, 0, %s1065
                %s1068 = smul.u32 %s1067, 8
                %s1069 = smul.u32 %s1067, 8
                %s1070 = scalar_lea.vmem %s1051, %s1068 [#allocation3]
                %s1071 = scalar_lea.vmem %s1053, %s1069
              $region76: #{tpu_custom_call.1} parent=63 // loop_footer
                %s1057 = sadd.s32 %s1055, 1
              $region77: #{tpu_custom_call.1} parent=63 // loop_footer_branch
                %1054 = sbr.rel target = $region73
              $region78: #{tpu_custom_call.1} parent=63 // loop_exit
                _
            $region64: #{tpu_custom_call.1} parent=55 // pred_fallthru
              _
          $region56: #{tpu_custom_call.1} parent=51 // pred_fallthru
            _
          %1145 = vnop
        $region52: #{tpu_custom_call.1} parent=47 // pred_fallthru
          _
      $region48: #{tpu_custom_call.1} parent=5 // pred_fallthru
        _
      %p1146 = scmp.le.s32.totalorder 2, %s15
      // Predicated region
      $region101: #{tpu_custom_call.1} parent=5 // pred_check
        %p1147 = pneg %p1146
      $region102: #{tpu_custom_call.1} parent=5 // pred_check_branch
        %1149 = sbr.rel (%p1147) target = $region104
      $region103: #{tpu_custom_call.1} parent=5 // pred_region
        %s1150 = ssub.s32 %s15, 2
        // Predicated region
        $region105: #{tpu_custom_call.1} parent=103 // pred_check
          %p1151 = pneg %p196
        $region106: #{tpu_custom_call.1} parent=103 // pred_check_branch
          %1153 = sbr.rel (%p1151) target = $region108
        $region107: #{tpu_custom_call.1} parent=103 // pred_region
          %s1154 = sand.u32 %s181, 1
          %s1155 = sand.u32 %s181, 1
          %s1156 = smul.addr %s1155, 104
          %s1157 = scalar_lea.vmem [#allocation3], %s1156
        $region108: #{tpu_custom_call.1} parent=103 // pred_fallthru
          _
      $region104: #{tpu_custom_call.1} parent=5 // pred_fallthru
        _
    $region6: #{tpu_custom_call.1} parent=1 // loop_footer
      %s19 = sadd.s32 1, %s15
    $region7: #{tpu_custom_call.1} parent=1 // loop_footer_branch
      %14 = sbr.rel target = $region3
    $region8: #{tpu_custom_call.1} parent=1 // loop_exit
      _

</llo_original>
